<compile_context>
chip_gen: v7x
topology: tpu7x:2x2x1
jax: 0.10.0
libtpu: 0.0.40
codegen_flags: <defaults>
</compile_context>

<pallas_src>
import functools

import jax
import jax.numpy as jnp
from jax.experimental import pallas as pl
from jax.experimental.pallas import tpu as pltpu

EPS = 1e-5


# ----------------------------- Pallas kernel --------------------------------
def _bn_relu(acc, gamma, beta, inv_count, c, w):
    """Training-mode BatchNorm (batch stats, biased var, eps=1e-5) + ReLU.

    acc   : (R, W*C) f32 pre-BN activations; rows = (n, h), lanes = (w, c)
    gamma : (1, W*C) f32 gamma tiled across the W lane groups
    beta  : (1, W*C) f32 beta tiled likewise

    Per-channel stats = sublane reduce over rows (XLU) followed by log2(W)
    lane rotate+add steps which simultaneously reduce over the W groups and
    broadcast the per-channel result back to every lane of that channel.
    No HBM selector constant, no lane<->sublane relayouts; all math in f32.
    """
    s = jnp.sum(acc, axis=0, keepdims=True)             # (1, W*C)
    sq = jnp.sum(acc * acc, axis=0, keepdims=True)      # (1, W*C)
    t = jnp.concatenate([s, sq], axis=0)                # (2, W*C)
    shift = c
    while shift < c * w:                                # static unroll: log2(W)
        t = t + pltpu.roll(t, shift=shift, axis=1)
        shift *= 2
    t = t * inv_count
    mean = t[0:1, :]
    var = t[1:2, :] - mean * mean                       # E[x^2] - E[x]^2
    xhat = (acc - mean) * jax.lax.rsqrt(var + EPS)
    return jnp.maximum(xhat * gamma + beta, 0.0)


def block1_kernel(lhs1_ref, rhs1_ref, rhs2_ref, p1_ref, p2_ref, out_ref,
                  *, n, h, w):
    """Fused ConvBNRelu(1,16) -> ConvBNRelu(16,16); lane-dense (N*H, W*C).

    lhs1_ref : (N*H, K1)     bf16 layer-1 im2row input (K1 = 3*(W+2) padded to 64)
    rhs1_ref : (K1, W*C)     bf16 layer-1 banded conv weights
    rhs2_ref : (3*W*C, W*C)  bf16 layer-2 banded conv weights, dy-concatenated
    p1_ref   : (2, W*C)      f32 [gamma; beta] of layer 1, tiled across W
    p2_ref   : (2, W*C)      f32 [gamma; beta] of layer 2, tiled across W
    out_ref  : (N*H, W*C)    f32 lane-dense output
    (Conv biases omitted: exactly cancelled by batch-stat BatchNorm.)
    """
    nh, wc = out_ref.shape
    c = wc // w
    inv_count = 1.0 / float(n * h * w)

    # ---------------- layer 1: ConvBNRelu(1, 16) ----------------------------
    acc1 = jnp.dot(lhs1_ref[...], rhs1_ref[...],
                   preferred_element_type=jnp.float32)            # (NH, WC) f32
    y1 = _bn_relu(acc1, p1_ref[0:1, :], p1_ref[1:2, :], inv_count, c, w)

    # ---------------- layer 2: ConvBNRelu(16, 16) ---------------------------
    # dy = 0 / 2 taps are y1 shifted by one image row: XLU sublane rotate +
    # image-boundary mask (rotation wraps across images / the whole batch).
    hrow = jax.lax.broadcasted_iota(jnp.int32, (nh, 1), 0) % h
    up_mask = (hrow != 0).astype(jnp.float32)            # no row h-1 at h == 0
    dn_mask = (hrow != h - 1).astype(jnp.float32)        # no row h+1 at h == H-1
    y_up = pltpu.roll(y1, shift=1, axis=0) * up_mask          # row h-1 (dy = 0)
    y_dn = pltpu.roll(y1, shift=nh - 1, axis=0) * dn_mask     # row h+1 (dy = 2)

    # Single K = 3*W*C matmul instead of three K = W*C matmuls.
    lhs2 = jnp.concatenate([y_up, y1, y_dn], axis=1).astype(rhs2_ref.dtype)
    acc2 = jnp.dot(lhs2, rhs2_ref[...],
                   preferred_element_type=jnp.float32)            # (NH, WC) f32
    out_ref[...] = _bn_relu(acc2, p2_ref[0:1, :], p2_ref[1:2, :], inv_count,
                            c, w)


# ----------------------- wrapper / layout plumbing ---------------------------
def _banded_w1(w1_hwio, w, wp, c):
    """(3,3,1,C) HWIO -> (3*Wp, W*C): rhs[dy*Wp+xw, x*C+co] = w1[dy, xw-x, 0, co]."""
    w1s = w1_hwio[:, :, 0, :]                                    # (3, 3, C)
    dy = jnp.arange(3)[:, None, None, None]
    xw = jnp.arange(wp)[None, :, None, None]
    x = jnp.arange(w)[None, None, :, None]
    co = jnp.arange(c)[None, None, None, :]
    dx = xw - x                                                  # padded coords
    valid = (dx >= 0) & (dx <= 2)
    vals = w1s[dy, jnp.clip(dx, 0, 2), co]                       # (3, Wp, W, C)
    vals = jnp.where(valid, vals, 0.0)
    return vals.reshape(3 * wp, w * c)


def _banded_w2(w2_hwio, w, c):
    """(3,3,C,C) HWIO -> (3*W*C, W*C); dy block: rhs[xi*C+ci, x*C+co] = w2[dy, xi-x+1, ci, co]."""
    xi = jnp.arange(w)[:, None, None, None]
    ci = jnp.arange(c)[None, :, None, None]
    x = jnp.arange(w)[None, None, :, None]
    co = jnp.arange(c)[None, None, None, :]
    dx = xi - x + 1                                              # unpadded coords
    valid = (dx >= 0) & (dx <= 2)
    dxc = jnp.clip(dx, 0, 2)
    mats = []
    for dy in range(3):
        vals = w2_hwio[dy][dxc, ci, co]                          # (W, C, W, C)
        vals = jnp.where(valid, vals, 0.0)
        mats.append(vals.reshape(w * c, w * c))
    return jnp.concatenate(mats, axis=0)                         # (3*W*C, W*C)


def prepare_block1(params, width, compute_dtype=jnp.bfloat16):
    """Build all param-only kernel constants ONCE (call eagerly, outside jit)."""
    (w1, b1, g1, bt1), (w2, b2, g2, bt2) = params
    del b1, b2      # conv bias is exactly cancelled by batch-stat BatchNorm
    c = w1.shape[-1]
    assert w2.shape == (3, 3, c, c)
    assert width & (width - 1) == 0, "W must be a power of two (lane-roll reduce)"
    wp = width + 2
    k1 = 64                                                      # 3*Wp=54 -> 64 (8-aligned)

    rhs1 = _banded_w1(jnp.asarray(w1, jnp.float32), width, wp, c)     # (54, W*C)
    rhs1 = jnp.pad(rhs1, ((0, k1 - 3 * wp), (0, 0))).astype(compute_dtype)
    rhs2 = _banded_w2(jnp.asarray(w2, jnp.float32), width, c).astype(compute_dtype)
    p1 = jnp.stack([jnp.tile(g1, width), jnp.tile(bt1, width)]).astype(jnp.float32)
    p2 = jnp.stack([jnp.tile(g2, width), jnp.tile(bt2, width)]).astype(jnp.float32)
    return (rhs1, rhs2, p1, p2)


def block1_forward(x_nchw, consts):
    """Block1.forward: NCHW in -> NCHW out (PyTorch convention), one Pallas call."""
    rhs1, rhs2, p1, p2 = consts
    n, cin, h, w = x_nchw.shape
    assert cin == 1
    wc = p1.shape[1]
    c = wc // w
    k1 = rhs1.shape[0]
    wp = w + 2

    # layer-1 im2row: drop Cin=1, pad spatially, 3 padded rows per output row.
    x2d = x_nchw[:, 0, :, :].astype(jnp.float32)                 # (N, H, W)
    xp = jnp.pad(x2d, ((0, 0), (1, 1), (1, 1)))                  # (N, H+2, W+2)
    rows = jnp.stack([xp[:, dy:dy + h, :] for dy in range(3)], axis=2)  # (N,H,3,Wp)
    lhs1 = rows.reshape(n * h, 3 * wp)
    lhs1 = jnp.pad(lhs1, ((0, 0), (0, k1 - 3 * wp))).astype(rhs1.dtype)  # (NH, 64)

    vmem = pl.BlockSpec(memory_space=pltpu.MemorySpace.VMEM)
    out2d = pl.pallas_call(
        functools.partial(block1_kernel, n=n, h=h, w=w),
        out_shape=jax.ShapeDtypeStruct((n * h, wc), jnp.float32),
        in_specs=[vmem] * 5,
        out_specs=vmem,
    )(lhs1, rhs1, rhs2, p1, p2)

    # (N*H, W*C) -> NHWC (free, contiguous) -> NCHW for PyTorch parity.
    # (Skip this transpose if the downstream consumer accepts NHWC.)
    return jnp.transpose(out2d.reshape(n, h, w, c), (0, 3, 1, 2))


# --------------------- pure-JAX reference for checking -----------------------
def _ref_conv_bn_relu(x, w, b, g, bt, matmul_dtype):
    y = jax.lax.conv_general_dilated(
        x.astype(matmul_dtype), w.astype(matmul_dtype),
        window_strides=(1, 1), padding=((1, 1), (1, 1)),
        dimension_numbers=("NHWC", "HWIO", "NHWC"),
        preferred_element_type=jnp.float32) + b.reshape(1, 1, 1, -1)
    mean = y.mean(axis=(0, 1, 2), keepdims=True)
    var = jnp.square(y - mean).mean(axis=(0, 1, 2), keepdims=True)
    yn = (y - mean) * jax.lax.rsqrt(var + EPS)
    return jnp.maximum(yn * g.reshape(1, 1, 1, -1) + bt.reshape(1, 1, 1, -1), 0.0)


def _ref_block1(x_nchw, params, matmul_dtype=jnp.float32):
    x = jnp.transpose(x_nchw, (0, 2, 3, 1)).astype(jnp.float32)
    for (w, b, g, bt) in params:
        x = _ref_conv_bn_relu(x, w, b, g, bt, matmul_dtype)
    return jnp.transpose(x, (0, 3, 1, 2))


def init_params(key):
    """Deterministic synthetic parameters (shapes from Block1.__init__)."""
    k = jax.random.split(key, 8)
    w1 = 0.3 * jax.random.normal(k[0], (3, 3, 1, 16), jnp.float32)   # HWIO
    b1 = 0.1 * jax.random.normal(k[1], (16,), jnp.float32)
    g1 = 1.0 + 0.1 * jax.random.normal(k[2], (16,), jnp.float32)
    bt1 = 0.1 * jax.random.normal(k[3], (16,), jnp.float32)
    w2 = 0.1 * jax.random.normal(k[4], (3, 3, 16, 16), jnp.float32)  # HWIO
    b2 = 0.1 * jax.random.normal(k[5], (16,), jnp.float32)
    g2 = 1.0 + 0.1 * jax.random.normal(k[6], (16,), jnp.float32)
    bt2 = 0.1 * jax.random.normal(k[7], (16,), jnp.float32)
    return ((w1, b1, g1, bt1), (w2, b2, g2, bt2))


if __name__ == "__main__":
    key = jax.random.PRNGKey(0)
    pkey, xkey = jax.random.split(key)
    params = init_params(pkey)

    # PyTorch-style input: NCHW, batch=2, in_channels=1, spatial=16x16
    x = jax.random.normal(xkey, (2, 1, 16, 16), jnp.float32)

    consts = prepare_block1(params, width=16)        # built once, outside jit
    fwd = jax.jit(block1_forward)
    out = jax.block_until_ready(fwd(x, consts))
    assert out.shape == (2, 16, 16, 16), out.shape

    # Matched-precision reference (bf16 conv operands, f32 BN): tight check.
    ref_bf16 = _ref_block1(x, params, matmul_dtype=jnp.bfloat16)
    err_m = float(jnp.max(jnp.abs(out - ref_bf16)))
    assert jnp.allclose(out, ref_bf16, atol=1e-2, rtol=1e-2), err_m

    # Full-f32 reference: loose check (bf16 MXU operand rounding only).
    ref_f32 = _ref_block1(x, params, matmul_dtype=jnp.float32)
    err_f = float(jnp.max(jnp.abs(out - ref_f32)))
    assert jnp.allclose(out, ref_f32, atol=5e-2, rtol=5e-2), err_f

    print("KERNEL_OK")
</pallas_src>

<mosaic_0001>
module attributes {stable_mosaic.version = 11 : i64} {
  func.func @block1_kernel(%arg0: memref<32x64xbf16, #tpu.memory_space<vmem>>, %arg1: memref<64x256xbf16, #tpu.memory_space<vmem>>, %arg2: memref<768x256xbf16, #tpu.memory_space<vmem>>, %arg3: memref<2x256xf32, #tpu.memory_space<vmem>>, %arg4: memref<2x256xf32, #tpu.memory_space<vmem>>, %arg5: memref<32x256xf32, #tpu.memory_space<vmem>>) attributes {dimension_semantics = [], scalar_prefetch = 0 : i64, scratch_operands = 0 : i64, tpu.core_type = #tpu.core_type<tc>} {
    %c0 = arith.constant 0 : index
    %c0_0 = arith.constant 0 : index
    %0 = vector.load %arg0[%c0, %c0_0] : memref<32x64xbf16, #tpu.memory_space<vmem>>, vector<32x64xbf16>
    %c0_1 = arith.constant 0 : index
    %c0_2 = arith.constant 0 : index
    %1 = vector.load %arg1[%c0_1, %c0_2] : memref<64x256xbf16, #tpu.memory_space<vmem>>, vector<64x256xbf16>
    %cst = arith.constant dense<0.000000e+00> : vector<32x256xf32>
    %2 = tpu.matmul %0, %1, %cst {dimension_numbers = #tpu.dot_dimension_numbers<[1], [0], [0], [1], [0, 0, 1, 1], [], []>} : vector<32x64xbf16>, vector<64x256xbf16>, vector<32x256xf32> -> vector<32x256xf32>
    %c0_3 = arith.constant 0 : index
    %c0_4 = arith.constant 0 : index
    %3 = vector.load %arg3[%c0_3, %c0_4] : memref<2x256xf32, #tpu.memory_space<vmem>>, vector<1x256xf32>
    %c1 = arith.constant 1 : index
    %c0_5 = arith.constant 0 : index
    %4 = vector.load %arg3[%c1, %c0_5] : memref<2x256xf32, #tpu.memory_space<vmem>>, vector<1x256xf32>
    %cst_6 = arith.constant dense<0.000000e+00> : vector<256xf32>
    %5 = vector.multi_reduction <add>, %2, %cst_6 [0] : vector<32x256xf32> to vector<256xf32>
    %6 = vector.shape_cast %5 : vector<256xf32> to vector<1x256xf32>
    %7 = arith.mulf %2, %2 : vector<32x256xf32>
    %cst_7 = arith.constant dense<0.000000e+00> : vector<256xf32>
    %8 = vector.multi_reduction <add>, %7, %cst_7 [0] : vector<32x256xf32> to vector<256xf32>
    %9 = vector.shape_cast %8 : vector<256xf32> to vector<1x256xf32>
    %10 = tpu.concatenate %6, %9 in 0 : vector<1x256xf32>, vector<1x256xf32> -> vector<2x256xf32>
    %c16_i32 = arith.constant 16 : i32
    %11 = tpu.dynamic_rotate %10 by %c16_i32 dim 1 : vector<2x256xf32>, i32 -> vector<2x256xf32>
    %12 = arith.addf %10, %11 : vector<2x256xf32>
    %c32_i32 = arith.constant 32 : i32
    %13 = tpu.dynamic_rotate %12 by %c32_i32 dim 1 : vector<2x256xf32>, i32 -> vector<2x256xf32>
    %14 = arith.addf %12, %13 : vector<2x256xf32>
    %c64_i32 = arith.constant 64 : i32
    %15 = tpu.dynamic_rotate %14 by %c64_i32 dim 1 : vector<2x256xf32>, i32 -> vector<2x256xf32>
    %16 = arith.addf %14, %15 : vector<2x256xf32>
    %c128_i32 = arith.constant 128 : i32
    %17 = tpu.dynamic_rotate %16 by %c128_i32 dim 1 : vector<2x256xf32>, i32 -> vector<2x256xf32>
    %18 = arith.addf %16, %17 : vector<2x256xf32>
    %cst_8 = arith.constant 0.001953125 : f32
    %19 = vector.broadcast %cst_8 : f32 to vector<2x256xf32>
    %20 = arith.mulf %18, %19 : vector<2x256xf32>
    %21 = vector.extract_strided_slice %20 {offsets = [0, 0], sizes = [1, 256], strides = [1, 1]} : vector<2x256xf32> to vector<1x256xf32>
    %22 = vector.extract_strided_slice %20 {offsets = [1, 0], sizes = [1, 256], strides = [1, 1]} : vector<2x256xf32> to vector<1x256xf32>
    %23 = arith.mulf %21, %21 : vector<1x256xf32>
    %24 = arith.subf %22, %23 : vector<1x256xf32>
    %25 = vector.broadcast %21 : vector<1x256xf32> to vector<32x256xf32>
    %26 = arith.subf %2, %25 : vector<32x256xf32>
    %cst_9 = arith.constant 9.99999974E-6 : f32
    %27 = vector.broadcast %cst_9 : f32 to vector<1x256xf32>
    %28 = arith.addf %24, %27 : vector<1x256xf32>
    %29 = math.rsqrt %28 : vector<1x256xf32>
    %30 = vector.broadcast %29 : vector<1x256xf32> to vector<32x256xf32>
    %31 = arith.mulf %26, %30 : vector<32x256xf32>
    %32 = vector.broadcast %3 : vector<1x256xf32> to vector<32x256xf32>
    %33 = arith.mulf %31, %32 : vector<32x256xf32>
    %34 = vector.broadcast %4 : vector<1x256xf32> to vector<32x256xf32>
    %35 = arith.addf %33, %34 : vector<32x256xf32>
    %cst_10 = arith.constant 0.000000e+00 : f32
    %36 = vector.broadcast %cst_10 : f32 to vector<32x256xf32>
    %37 = arith.maximumf %35, %36 : vector<32x256xf32>
    %38 = tpu.iota {dimensions = array<i32: 0>} : vector<32x1xi32>
    %c16_i32_11 = arith.constant 16 : i32
    %c0_i32 = arith.constant 0 : i32
    %39 = arith.cmpi eq, %c16_i32_11, %c0_i32 : i32
    %c1_i32 = arith.constant 1 : i32
    %40 = arith.select %39, %c1_i32, %c16_i32_11 : i32
    %41 = vector.broadcast %40 : i32 to vector<32x1xi32>
    %42 = arith.remsi %38, %41 : vector<32x1xi32>
    %c0_i32_12 = arith.constant 0 : i32
    %43 = vector.broadcast %c0_i32_12 : i32 to vector<32x1xi32>
    %44 = arith.cmpi ne, %42, %43 : vector<32x1xi32>
    %c0_i32_13 = arith.constant 0 : i32
    %45 = vector.broadcast %c0_i32_13 : i32 to vector<32x1xi32>
    %46 = arith.cmpi slt, %42, %45 : vector<32x1xi32>
    %c0_i32_14 = arith.constant 0 : i32
    %47 = arith.cmpi slt, %40, %c0_i32_14 : i32
    %48 = vector.broadcast %47 : i1 to vector<32x1xi1>
    %49 = vector.broadcast %48 : vector<32x1xi1> to vector<32x1xi1>
    %50 = arith.xori %46, %49 : vector<32x1xi1>
    %51 = arith.andi %50, %44 : vector<32x1xi1>
    %52 = vector.broadcast %40 : i32 to vector<32x1xi32>
    %53 = arith.addi %42, %52 : vector<32x1xi32>
    %54 = arith.select %51, %53, %42 : vector<32x1xi1>, vector<32x1xi32>
    %c0_i32_15 = arith.constant 0 : i32
    %55 = vector.broadcast %c0_i32_15 : i32 to vector<32x1xi32>
    %56 = arith.cmpi ne, %54, %55 : vector<32x1xi32>
    %57 = arith.extui %56 : vector<32x1xi1> to vector<32x1xi32>
    %58 = arith.sitofp %57 : vector<32x1xi32> to vector<32x1xf32>
    %c15_i32 = arith.constant 15 : i32
    %59 = vector.broadcast %c15_i32 : i32 to vector<32x1xi32>
    %60 = arith.cmpi ne, %54, %59 : vector<32x1xi32>
    %61 = arith.extui %60 : vector<32x1xi1> to vector<32x1xi32>
    %62 = arith.sitofp %61 : vector<32x1xi32> to vector<32x1xf32>
    %c1_i32_16 = arith.constant 1 : i32
    %63 = tpu.dynamic_rotate %37 by %c1_i32_16 dim 0 : vector<32x256xf32>, i32 -> vector<32x256xf32>
    %64 = vector.broadcast %58 : vector<32x1xf32> to vector<32x256xf32>
    %65 = arith.mulf %63, %64 : vector<32x256xf32>
    %c31_i32 = arith.constant 31 : i32
    %66 = tpu.dynamic_rotate %37 by %c31_i32 dim 0 : vector<32x256xf32>, i32 -> vector<32x256xf32>
    %67 = vector.broadcast %62 : vector<32x1xf32> to vector<32x256xf32>
    %68 = arith.mulf %66, %67 : vector<32x256xf32>
    %69 = tpu.concatenate %65, %37, %68 in 1 : vector<32x256xf32>, vector<32x256xf32>, vector<32x256xf32> -> vector<32x768xf32>
    %70 = arith.truncf %69 : vector<32x768xf32> to vector<32x768xbf16>
    %c0_17 = arith.constant 0 : index
    %c0_18 = arith.constant 0 : index
    %71 = vector.load %arg2[%c0_17, %c0_18] : memref<768x256xbf16, #tpu.memory_space<vmem>>, vector<768x256xbf16>
    %cst_19 = arith.constant dense<0.000000e+00> : vector<32x256xf32>
    %72 = tpu.matmul %70, %71, %cst_19 {dimension_numbers = #tpu.dot_dimension_numbers<[1], [0], [0], [1], [0, 0, 1, 1], [], []>} : vector<32x768xbf16>, vector<768x256xbf16>, vector<32x256xf32> -> vector<32x256xf32>
    %c0_20 = arith.constant 0 : index
    %c0_21 = arith.constant 0 : index
    %73 = vector.load %arg4[%c0_20, %c0_21] : memref<2x256xf32, #tpu.memory_space<vmem>>, vector<1x256xf32>
    %c1_22 = arith.constant 1 : index
    %c0_23 = arith.constant 0 : index
    %74 = vector.load %arg4[%c1_22, %c0_23] : memref<2x256xf32, #tpu.memory_space<vmem>>, vector<1x256xf32>
    %cst_24 = arith.constant dense<0.000000e+00> : vector<256xf32>
    %75 = vector.multi_reduction <add>, %72, %cst_24 [0] : vector<32x256xf32> to vector<256xf32>
    %76 = vector.shape_cast %75 : vector<256xf32> to vector<1x256xf32>
    %77 = arith.mulf %72, %72 : vector<32x256xf32>
    %cst_25 = arith.constant dense<0.000000e+00> : vector<256xf32>
    %78 = vector.multi_reduction <add>, %77, %cst_25 [0] : vector<32x256xf32> to vector<256xf32>
    %79 = vector.shape_cast %78 : vector<256xf32> to vector<1x256xf32>
    %80 = tpu.concatenate %76, %79 in 0 : vector<1x256xf32>, vector<1x256xf32> -> vector<2x256xf32>
    %c16_i32_26 = arith.constant 16 : i32
    %81 = tpu.dynamic_rotate %80 by %c16_i32_26 dim 1 : vector<2x256xf32>, i32 -> vector<2x256xf32>
    %82 = arith.addf %80, %81 : vector<2x256xf32>
    %c32_i32_27 = arith.constant 32 : i32
    %83 = tpu.dynamic_rotate %82 by %c32_i32_27 dim 1 : vector<2x256xf32>, i32 -> vector<2x256xf32>
    %84 = arith.addf %82, %83 : vector<2x256xf32>
    %c64_i32_28 = arith.constant 64 : i32
    %85 = tpu.dynamic_rotate %84 by %c64_i32_28 dim 1 : vector<2x256xf32>, i32 -> vector<2x256xf32>
    %86 = arith.addf %84, %85 : vector<2x256xf32>
    %c128_i32_29 = arith.constant 128 : i32
    %87 = tpu.dynamic_rotate %86 by %c128_i32_29 dim 1 : vector<2x256xf32>, i32 -> vector<2x256xf32>
    %88 = arith.addf %86, %87 : vector<2x256xf32>
    %cst_30 = arith.constant 0.001953125 : f32
    %89 = vector.broadcast %cst_30 : f32 to vector<2x256xf32>
    %90 = arith.mulf %88, %89 : vector<2x256xf32>
    %91 = vector.extract_strided_slice %90 {offsets = [0, 0], sizes = [1, 256], strides = [1, 1]} : vector<2x256xf32> to vector<1x256xf32>
    %92 = vector.extract_strided_slice %90 {offsets = [1, 0], sizes = [1, 256], strides = [1, 1]} : vector<2x256xf32> to vector<1x256xf32>
    %93 = arith.mulf %91, %91 : vector<1x256xf32>
    %94 = arith.subf %92, %93 : vector<1x256xf32>
    %95 = vector.broadcast %91 : vector<1x256xf32> to vector<32x256xf32>
    %96 = arith.subf %72, %95 : vector<32x256xf32>
    %cst_31 = arith.constant 9.99999974E-6 : f32
    %97 = vector.broadcast %cst_31 : f32 to vector<1x256xf32>
    %98 = arith.addf %94, %97 : vector<1x256xf32>
    %99 = math.rsqrt %98 : vector<1x256xf32>
    %100 = vector.broadcast %99 : vector<1x256xf32> to vector<32x256xf32>
    %101 = arith.mulf %96, %100 : vector<32x256xf32>
    %102 = vector.broadcast %73 : vector<1x256xf32> to vector<32x256xf32>
    %103 = arith.mulf %101, %102 : vector<32x256xf32>
    %104 = vector.broadcast %74 : vector<1x256xf32> to vector<32x256xf32>
    %105 = arith.addf %103, %104 : vector<32x256xf32>
    %cst_32 = arith.constant 0.000000e+00 : f32
    %106 = vector.broadcast %cst_32 : f32 to vector<32x256xf32>
    %107 = arith.maximumf %105, %106 : vector<32x256xf32>
    %c0_33 = arith.constant 0 : index
    %c0_34 = arith.constant 0 : index
    %108 = vector.load %arg5[%c0_33, %c0_34] : memref<32x256xf32, #tpu.memory_space<vmem>>, vector<32x256xf32>
    tpu.vector_store %arg5[%c0_33, %c0_34], %107 {strides = array<i32>} : memref<32x256xf32, #tpu.memory_space<vmem>>, vector<32x256xf32>,
    return
  }
}

</mosaic_0001>

<llo_original>
// kernel: block1_forward.1
$region0: #{block1_forward.1}
  #allocation0 [shape = 'u32[]', space=smem, size = 0x4, offset = 0x4, fixed_abs, tag = 'smem constant byte address 0x4 - core index']
  #allocation1 [shape = 'u32[144,128]{1,0:T(1,128)}', space=vmem, size = 0x12000, scoped, tag = 'internal scratch']
  %s0 = inlined_call_operand.vmem [shape: bf16[32,64], index: 0, kind: input, shape index: {}]
  %s1 = inlined_call_operand.vmem [shape: bf16[64,256], index: 1, kind: input, shape index: {}]
  %s2 = inlined_call_operand.hbm [shape: bf16[768,256], index: 2, kind: input, shape index: {}]
  %s3 = inlined_call_operand.vmem [shape: f32[2,256], index: 3, kind: input, shape index: {}]
  %s4 = inlined_call_operand.vmem [shape: f32[2,256], index: 4, kind: input, shape index: {}]
  %s5 = inlined_call_operand.vmem [shape: f32[32,256], index: 5, kind: output, shape index: {}]
  %s6 = sld [smem:[#allocation0]]
  $region34: #{block1_forward.1} parent=0
    _
  %s8 = ssub.s32 1, %s6
  %s9 = scalar_select 0, %s8, %s6
  $region1: #{block1_forward.1} parent=0
    #allocation2 [shape = 'u8[393216]{0}', space=vmem, size = 0x60000, scoped, tag = 'input window, operand 2, single buffered']
    #allocation3 [shape = 's32[1]{0}', space=sflag, size = 0x4, scoped, tag = 'scoped memory for block1_forward.1']
    %10 = vsyncpa [#allocation3], 0
    // Predicated region
    $region2: #{block1_forward.1} parent=1 // pred_check
      _
    $region3: #{block1_forward.1} parent=1 // pred_check_branch
      %12 = sbr.rel (0) target = $region5
    $region4: #{block1_forward.1} parent=1 // pred_region
      _
    $region5: #{block1_forward.1} parent=1 // pred_fallthru
      _
    // Predicated region
    $region6: #{block1_forward.1} parent=1 // pred_check
      _
    $region7: #{block1_forward.1} parent=1 // pred_check_branch
      %14 = sbr.rel (0) target = $region9
    $region8: #{block1_forward.1} parent=1 // pred_region
      _
    $region9: #{block1_forward.1} parent=1 // pred_fallthru
      _
    // Predicated region
    $region10: #{block1_forward.1} parent=1 // pred_check
      _
    $region11: #{block1_forward.1} parent=1 // pred_check_branch
      %16 = sbr.rel (0) target = $region13
    $region12: #{block1_forward.1} parent=1 // pred_region
      %s18 = ssub.s32 12288, 12288
      %19 = vsyncadd [#allocation3], %s18
      %s20 = sshll.u32 [#allocation2], 4
      %s21 = int_to_ptr.vmem [resolvable:$true] %s20
      %26 = dma.hbm_to_vmem [thread:$0]  %s2, 12288, %s21, [#allocation3], 128, 128, 8
    $region13: #{block1_forward.1} parent=1 // pred_fallthru
      _
    // Predicated region
    $region14: #{block1_forward.1} parent=1 // pred_check
      _
    $region15: #{block1_forward.1} parent=1 // pred_check_branch
      %28 = sbr.rel (0) target = $region17
    $region16: #{block1_forward.1} parent=1 // pred_region
      _
    $region17: #{block1_forward.1} parent=1 // pred_fallthru
      _
    // Predicated region
    $region18: #{block1_forward.1} parent=1 // pred_check
      _
    $region19: #{block1_forward.1} parent=1 // pred_check_branch
      %30 = sbr.rel (0) target = $region21
    $region20: #{block1_forward.1} parent=1 // pred_region
      _
    $region21: #{block1_forward.1} parent=1 // pred_fallthru
      _
    // Predicated region
    $region22: #{block1_forward.1} parent=1 // pred_check
      _
    $region23: #{block1_forward.1} parent=1 // pred_check_branch
      %32 = sbr.rel (0) target = $region25
    $region24: #{block1_forward.1} parent=1 // pred_region
      %33 = dma.done [#allocation3], 12288
    $region25: #{block1_forward.1} parent=1 // pred_fallthru
      _
    %v35 = vld [vmem:[%s0] sm:$0xf]
    %v36 = vld [vmem:[%s0 + $0x4] sm:$0xf]
    %v37 = vld [vmem:[%s0 + $0x8] sm:$0xf]
    %v38 = vld [vmem:[%s0 + $0xc] sm:$0xf]
    %v39 = vld [vmem:[%s1] sm:$0xff]
    %v40 = vld [vmem:[%s1 + $0x8] sm:$0xff]
    %v41 = vld [vmem:[%s1 + $0x10] sm:$0xff]
    %v42 = vld [vmem:[%s1 + $0x18] sm:$0xff]
    %v43 = vld [vmem:[%s1 + $0x20] sm:$0xff]
    %v44 = vld [vmem:[%s1 + $0x28] sm:$0xff]
    %v45 = vld [vmem:[%s1 + $0x30] sm:$0xff]
    %v46 = vld [vmem:[%s1 + $0x38] sm:$0xff]
    %v51 = vunpack.c.l.b16 %v35
    %v52 = vunpack.c.l.b16 %v36
    %v53 = vunpack.c.l.b16 %v37
    %v54 = vunpack.c.l.b16 %v38
    %v55 = vpack.c.b16 %v52, %v51
    %v56 = vpack.c.b16 %v54, %v53
    %v65 = vunpack.c.l.b16 %v39
    %v66 = vunpack.c.h.b16 %v39
    %v67 = vunpack.c.l.b16 %v40
    %v68 = vunpack.c.h.b16 %v40
    %v69 = vunpack.c.l.b16 %v41
    %v70 = vunpack.c.h.b16 %v41
    %v71 = vunpack.c.l.b16 %v42
    %v72 = vunpack.c.h.b16 %v42
    %v73 = vunpack.c.l.b16 %v43
    %v74 = vunpack.c.h.b16 %v43
    %v75 = vunpack.c.l.b16 %v44
    %v76 = vunpack.c.h.b16 %v44
    %v77 = vunpack.c.l.b16 %v45
    %v78 = vunpack.c.h.b16 %v45
    %v79 = vunpack.c.l.b16 %v46
    %v80 = vunpack.c.h.b16 %v46
    %v81 = vpack.c.b16 %v67, %v65
    %v82 = vpack.c.b16 %v68, %v66
    %v83 = vpack.c.b16 %v71, %v69
    %v84 = vpack.c.b16 %v72, %v70
    %v85 = vpack.c.b16 %v75, %v73
    %v86 = vpack.c.b16 %v76, %v74
    %v87 = vpack.c.b16 %v79, %v77
    %v88 = vpack.c.b16 %v80, %v78
    %vm97 = vcmask 523264
    %v99 = vsel %vm97, %v55, 0
    %v102 = vsel %vm97, %v56, 0
    %104 = vmatprep.subr.bf16.mxu0 %v82
    %105 = vmatpush1.bf16.msra.mxu0 %v81
    %106 = vmatprep.subr.bf16.mxu0 %v84
    %107 = vmatpush1.bf16.msra.mxu0 %v83
    %108 = vmatprep.subr.bf16.mxu0 %v86
    %109 = vmatpush1.bf16.msra.mxu0 %v85
    %110 = vmatprep.subr.bf16.mxu0 %v88
    %111 = vmatpush1.bf16.msra.mxu0 %v87
    %112 = vmatprep.subr.bf16.mxu0 0
    %113 = vmatpush1.bf16.msra.mxu0 0
    %114 = vmatprep.subr.bf16.mxu0 0
    %115 = vmatpush1.bf16.msra.mxu0 0
    %116 = vmatprep.subr.bf16.mxu0 0
    %117 = vmatpush1.bf16.msra.mxu0 0
    %118 = vmatprep.subr.bf16.mxu0 0
    %119 = vmatpush1.bf16.msra.mxu0 0
    %120 = vmatprep.subr.bf16.mxu0 0
    %121 = vmatpush1.bf16.msra.mxu0 0
    %122 = vmatprep.subr.bf16.mxu0 0
    %123 = vmatpush1.bf16.msra.mxu0 0
    %124 = vmatprep.subr.bf16.mxu0 0
    %125 = vmatpush1.bf16.msra.mxu0 0
    %126 = vmatprep.subr.bf16.mxu0 0
    %127 = vmatpush1.bf16.msra.mxu0 0
    %128 = vmatprep.subr.bf16.mxu0 0
    %129 = vmatpush1.bf16.msra.mxu0 0
    %130 = vmatprep.subr.bf16.mxu0 0
    %131 = vmatpush1.bf16.msra.mxu0 0
    %132 = vmatprep.subr.bf16.mxu0 0
    %133 = vmatpush1.bf16.msra.mxu0 0
    %134 = vmatprep.subr.bf16.mxu0 0
    %135 = vmatpush1.bf16.msra.mxu0 0
    %136 = vmatprep.mubr.bf16.mxu0 0
    %137 = vmatmul.mubr.bf16.gmra.mrb[0].mxu0 %v99
    %v138 = vpop.f32.mrb[0].mxu0
    %v139 = vadd.f32 0.0, %v138
    %v140 = vpop.f32.mrb[0].mxu0
    %v141 = vadd.f32 0.0, %v140
    %v142 = vpop.f32.mrb[0].mxu0
    %v143 = vadd.f32 0.0, %v142
    %v144 = vpop.f32.mrb[0].mxu0
    %v145 = vadd.f32 0.0, %v144
    %146 = vmatprep.mubr.bf16.mxu0 0
    %147 = vmatmul.mubr.bf16.gmra.mrb[0].mxu0 %v102
    %v148 = vpop.f32.mrb[0].mxu0
    %v149 = vadd.f32 0.0, %v148
    %v150 = vpop.f32.mrb[0].mxu0
    %v151 = vadd.f32 0.0, %v150
    %v152 = vpop.f32.mrb[0].mxu0
    %v153 = vadd.f32 0.0, %v152
    %v154 = vpop.f32.mrb[0].mxu0
    %v155 = vadd.f32 0.0, %v154
    %156 = vdwg.mxu0
    %v157 = vld [vmem:[%s3] ss:$2 sm:$0x3]
    %s158 = scalar_lea.vmem %s3, 1
    %v159 = vld [vmem:[%s158] ss:$2 sm:$0x3]
    %v160 = vadd.f32 %v139, %v143
    %v161 = vadd.f32 %v160, %v149
    %v162 = vadd.f32 %v161, %v153
    %v163 = vrot.slane %v162, 4
    %v164 = vadd.f32 %v162, %v163
    %v165 = vrot.slane %v164, 2
    %v166 = vadd.f32 %v164, %v165
    %v167 = vrot.slane %v166, 1
    %v168 = vadd.f32 %v166, %v167
    %v169 = vadd.f32 %v141, %v145
    %v170 = vadd.f32 %v169, %v151
    %v171 = vadd.f32 %v170, %v155
    %v172 = vrot.slane %v171, 4
    %v173 = vadd.f32 %v171, %v172
    %v174 = vrot.slane %v173, 2
    %v175 = vadd.f32 %v173, %v174
    %v176 = vrot.slane %v175, 1
    %v177 = vadd.f32 %v175, %v176
    %v178 = vmul.f32 %v139, %v139
    %v179 = vmul.f32 %v141, %v141
    %v180 = vmul.f32 %v143, %v143
    %v181 = vmul.f32 %v145, %v145
    %v182 = vmul.f32 %v149, %v149
    %v183 = vmul.f32 %v151, %v151
    %v184 = vmul.f32 %v153, %v153
    %v185 = vmul.f32 %v155, %v155
    %v186 = vadd.f32 %v178, %v180
    %v187 = vadd.f32 %v186, %v182
    %v188 = vadd.f32 %v187, %v184
    %v189 = vrot.slane %v188, 4
    %v190 = vadd.f32 %v188, %v189
    %v191 = vrot.slane %v190, 2
    %v192 = vadd.f32 %v190, %v191
    %v193 = vrot.slane %v192, 1
    %v194 = vadd.f32 %v192, %v193
    %v195 = vadd.f32 %v179, %v181
    %v196 = vadd.f32 %v195, %v183
    %v197 = vadd.f32 %v196, %v185
    %v198 = vrot.slane %v197, 4
    %v199 = vadd.f32 %v197, %v198
    %v200 = vrot.slane %v199, 2
    %v201 = vadd.f32 %v199, %v200
    %v202 = vrot.slane %v201, 1
    %v203 = vadd.f32 %v201, %v202
    %vm204 = vcmask 1040384
    %v205 = vsel %vm204, %v168, %v194
    %v206 = vsel %vm204, %v177, %v203
    %207 = vrot.lane.b32.xlu0 %v205, 16
    %v208 = vpop.permute.xlu0 %207
    %209 = vrot.lane.b32.xlu0 %v206, 16
    %v210 = vpop.permute.xlu0 %209
    %v211 = vlaneseq
    %v212 = vand.u32 %v211, 127
    %vm213 = vcmp.lt.s32.totalorder %v212, 16
    %v214 = vsel %vm213, %v208, %v210
    %v215 = vsel %vm213, %v210, %v208
    %v216 = vadd.f32 %v205, %v215
    %v217 = vadd.f32 %v206, %v214
    %218 = vrot.lane.b32.xlu0 %v216, 32
    %v219 = vpop.permute.xlu0 %218
    %220 = vrot.lane.b32.xlu0 %v217, 32
    %v221 = vpop.permute.xlu0 %220
    %vm222 = vcmp.lt.s32.totalorder %v212, 32
    %v223 = vsel %vm222, %v219, %v221
    %v224 = vsel %vm222, %v221, %v219
    %v225 = vadd.f32 %v216, %v224
    %v226 = vadd.f32 %v217, %v223
    %227 = vrot.lane.b32.xlu0 %v225, 64
    %v228 = vpop.permute.xlu0 %227
    %229 = vrot.lane.b32.xlu0 %v226, 64
    %v230 = vpop.permute.xlu0 %229
    %vm231 = vcmp.lt.s32.totalorder %v212, 64
    %v232 = vsel %vm231, %v228, %v230
    %v233 = vsel %vm231, %v230, %v228
    %v234 = vadd.f32 %v225, %v233
    %v235 = vadd.f32 %v226, %v232
    %v236 = vadd.f32 %v234, %v235
    %v237 = vmul.f32 %v236, 0.001953125
    %v238 = vmul.f32 %v237, %v237
    %v240 = vrot.slane %v238, 7
    %v242 = vsub.f32 %v237, %v240
    %v243 = vlaneseq
    %v244 = vshrl.u32 %v243, 7
    %v245 = vsub.s32 0, %v244
    %v246 = vrot.slane %v237, %v245
    %v247 = vsub.f32 %v139, %v246
    %v248 = vsub.f32 %v141, %v246
    %v249 = vsub.f32 %v143, %v246
    %v250 = vsub.f32 %v145, %v246
    %v251 = vsub.f32 %v149, %v246
    %v252 = vsub.f32 %v151, %v246
    %v253 = vsub.f32 %v153, %v246
    %v254 = vsub.f32 %v155, %v246
    %v255 = vadd.f32 %v242, 1e-05
    %v256 = vrsqrt.pop %v255
    %v257 = vlaneseq
    %v258 = vshrl.u32 %v257, 7
    %v259 = vsub.s32 1, %v258
    %v260 = vrot.slane %v256, %v259
    %v261 = vmul.f32 %v247, %v260
    %v262 = vmul.f32 %v248, %v260
    %v263 = vmul.f32 %v249, %v260
    %v264 = vmul.f32 %v250, %v260
    %v265 = vmul.f32 %v251, %v260
    %v266 = vmul.f32 %v252, %v260
    %v267 = vmul.f32 %v253, %v260
    %v268 = vmul.f32 %v254, %v260
    %v270 = vlaneseq
    %v271 = vshrl.u32 %v270, 7
    %v272 = vsub.s32 0, %v271
    %v273 = vrot.slane %v157, %v272
    %v274 = vlaneseq
    %v275 = vshrl.u32 %v274, 7
    %v276 = vsub.s32 1, %v275
    %v277 = vrot.slane %v157, %v276
    %v280 = vmul.f32 %v261, %v273
    %v281 = vmul.f32 %v262, %v277
    %v282 = vmul.f32 %v263, %v273
    %v283 = vmul.f32 %v264, %v277
    %v284 = vmul.f32 %v265, %v273
    %v285 = vmul.f32 %v266, %v277
    %v286 = vmul.f32 %v267, %v273
    %v287 = vmul.f32 %v268, %v277
    %v289 = vlaneseq
    %v290 = vshrl.u32 %v289, 7
    %v291 = vsub.s32 0, %v290
    %v292 = vrot.slane %v159, %v291
    %v293 = vlaneseq
    %v294 = vshrl.u32 %v293, 7
    %v295 = vsub.s32 1, %v294
    %v296 = vrot.slane %v159, %v295
    %v299 = vadd.f32 %v280, %v292
    %v300 = vadd.f32 %v281, %v296
    %v301 = vadd.f32 %v282, %v292
    %v302 = vadd.f32 %v283, %v296
    %v303 = vadd.f32 %v284, %v292
    %v304 = vadd.f32 %v285, %v296
    %v305 = vadd.f32 %v286, %v292
    %v306 = vadd.f32 %v287, %v296
    %v307 = vmax.f32 %v299, 0.0
    %v308 = vmax.f32 %v300, 0.0
    %v309 = vmax.f32 %v301, 0.0
    %v310 = vmax.f32 %v302, 0.0
    %v311 = vmax.f32 %v303, 0.0
    %v312 = vmax.f32 %v304, 0.0
    %v313 = vmax.f32 %v305, 0.0
    %v314 = vmax.f32 %v306, 0.0
    %v315 = vlaneseq
    %v316 = vshrl.u32 %v315, 7
    %v317 = vadd.s32 %v316, 8
    %v318 = vadd.s32 %v316, 16
    %v319 = vadd.s32 %v316, 24
    %vm320 = vcmp.lt.s32.totalorder %v316, 0
    %v321 = vsub.s32 0, %v316
    %v322 = vsel %vm320, %v321, %v316
    %v323 = vshrl.u32 %v322, 4
    %v324 = vand.u32 %v322, 15
    %v325 = vsub.s32 0, %v324
    %v326 = vsel %vm320, %v325, %v324
    %vm327 = vcmp.lt.s32.totalorder %v317, 0
    %v328 = vsub.s32 0, %v317
    %v329 = vsel %vm327, %v328, %v317
    %v330 = vshrl.u32 %v329, 4
    %v331 = vand.u32 %v329, 15
    %v332 = vsub.s32 0, %v331
    %v333 = vsel %vm327, %v332, %v331
    %vm334 = vcmp.lt.s32.totalorder %v318, 0
    %v335 = vsub.s32 0, %v318
    %v336 = vsel %vm334, %v335, %v318
    %v337 = vshrl.u32 %v336, 4
    %v338 = vand.u32 %v336, 15
    %v339 = vsub.s32 0, %v338
    %v340 = vsel %vm334, %v339, %v338
    %vm341 = vcmp.lt.s32.totalorder %v319, 0
    %v342 = vsub.s32 0, %v319
    %v343 = vsel %vm341, %v342, %v319
    %v344 = vshrl.u32 %v343, 4
    %v345 = vand.u32 %v343, 15
    %v346 = vsub.s32 0, %v345
    %v347 = vsel %vm341, %v346, %v345
    %vm348 = vcmp.ne.s32.totalorder %v326, 0
    %vm349 = vcmp.ne.s32.totalorder %v333, 0
    %vm350 = vcmp.ne.s32.totalorder %v340, 0
    %vm351 = vcmp.ne.s32.totalorder %v347, 0
    %vm352 = vcmp.lt.s32.totalorder %v326, 0
    %vm353 = vcmp.lt.s32.totalorder %v333, 0
    %vm354 = vcmp.lt.s32.totalorder %v340, 0
    %vm355 = vcmp.lt.s32.totalorder %v347, 0
    %vm356 = vmand %vm352, %vm348
    %vm357 = vmand %vm353, %vm349
    %vm358 = vmand %vm354, %vm350
    %vm359 = vmand %vm355, %vm351
    %v360 = vadd.s32 %v326, 16
    %v361 = vadd.s32 %v333, 16
    %v362 = vadd.s32 %v340, 16
    %v363 = vadd.s32 %v347, 16
    %v364 = vsel %vm356, %v360, %v326
    %v365 = vsel %vm357, %v361, %v333
    %v366 = vsel %vm358, %v362, %v340
    %v367 = vsel %vm359, %v363, %v347
    %vm368 = vcmp.ne.s32.totalorder %v364, 0
    %vm369 = vcmp.ne.s32.totalorder %v365, 0
    %vm370 = vcmp.ne.s32.totalorder %v366, 0
    %vm371 = vcmp.ne.s32.totalorder %v367, 0
    %v372 = vsel %vm368, 1, 0
    %v373 = vsel %vm369, 1, 0
    %v374 = vsel %vm370, 1, 0
    %v375 = vsel %vm371, 1, 0
    %v376 = vcvt.s32.f32 %v372
    %v377 = vcvt.s32.f32 %v373
    %v378 = vcvt.s32.f32 %v374
    %v379 = vcvt.s32.f32 %v375
    %vm380 = vcmp.ne.s32.totalorder %v364, 15
    %vm381 = vcmp.ne.s32.totalorder %v365, 15
    %vm382 = vcmp.ne.s32.totalorder %v366, 15
    %vm383 = vcmp.ne.s32.totalorder %v367, 15
    %v384 = vsel %vm380, 1, 0
    %v385 = vsel %vm381, 1, 0
    %v386 = vsel %vm382, 1, 0
    %v387 = vsel %vm383, 1, 0
    %v388 = vcvt.s32.f32 %v384
    %v389 = vcvt.s32.f32 %v385
    %v390 = vcvt.s32.f32 %v386
    %v391 = vcvt.s32.f32 %v387
    %v392 = vrot.slane %v307, 7
    %v393 = vrot.slane %v308, 7
    %v394 = vrot.slane %v309, 7
    %v395 = vrot.slane %v310, 7
    %v396 = vrot.slane %v311, 7
    %v397 = vrot.slane %v312, 7
    %v398 = vrot.slane %v313, 7
    %v399 = vrot.slane %v314, 7
    %vm400 = vcmp.lt.s32.totalorder %v316, 1
    %v401 = vsel %vm400, %v396, %v398
    %v402 = vsel %vm400, %v397, %v399
    %v403 = vsel %vm400, %v394, %v396
    %v404 = vsel %vm400, %v395, %v397
    %v405 = vsel %vm400, %v392, %v394
    %v406 = vsel %vm400, %v393, %v395
    %v407 = vsel %vm400, %v398, %v392
    %v408 = vsel %vm400, %v399, %v393
    %v409 = vmul.f32 %v407, %v376
    %v410 = vmul.f32 %v408, %v376
    %v411 = vmul.f32 %v405, %v377
    %v412 = vmul.f32 %v406, %v377
    %v413 = vmul.f32 %v403, %v378
    %v414 = vmul.f32 %v404, %v378
    %v415 = vmul.f32 %v401, %v379
    %v416 = vmul.f32 %v402, %v379
    %v417 = vrot.slane %v307, 1
    %v418 = vrot.slane %v308, 1
    %v419 = vrot.slane %v309, 1
    %v420 = vrot.slane %v310, 1
    %v421 = vrot.slane %v311, 1
    %v422 = vrot.slane %v312, 1
    %v423 = vrot.slane %v313, 1
    %v424 = vrot.slane %v314, 1
    %vm425 = vcmp.lt.s32.totalorder %v316, 7
    %v426 = vsel %vm425, %v421, %v423
    %v427 = vsel %vm425, %v422, %v424
    %v428 = vsel %vm425, %v419, %v421
    %v429 = vsel %vm425, %v420, %v422
    %v430 = vsel %vm425, %v417, %v419
    %v431 = vsel %vm425, %v418, %v420
    %v432 = vsel %vm425, %v423, %v417
    %v433 = vsel %vm425, %v424, %v418
    %v434 = vmul.f32 %v430, %v388
    %v435 = vmul.f32 %v431, %v388
    %v436 = vmul.f32 %v428, %v389
    %v437 = vmul.f32 %v429, %v389
    %v438 = vmul.f32 %v426, %v390
    %v439 = vmul.f32 %v427, %v390
    %v440 = vmul.f32 %v432, %v391
    %v441 = vmul.f32 %v433, %v391
    %v442 = vpack.c.bf16 %v411, %v409
    %v443 = vpack.c.bf16 %v412, %v410
    %v444 = vpack.c.bf16 %v309, %v307
    %v445 = vpack.c.bf16 %v310, %v308
    %v446 = vpack.c.bf16 %v436, %v434
    %v447 = vpack.c.bf16 %v437, %v435
    %v448 = vpack.c.bf16 %v415, %v413
    %v449 = vpack.c.bf16 %v416, %v414
    %v450 = vpack.c.bf16 %v313, %v311
    %v451 = vpack.c.bf16 %v314, %v312
    %v452 = vpack.c.bf16 %v440, %v438
    %v453 = vpack.c.bf16 %v441, %v439
    %v454 = vld [vmem:[#allocation2] sm:$0xff]
    %v455 = vld [vmem:[#allocation2 + $0x8] sm:$0xff]
    %v456 = vld [vmem:[#allocation2 + $0x10] sm:$0xff]
    %v457 = vld [vmem:[#allocation2 + $0x18] sm:$0xff]
    %v458 = vld [vmem:[#allocation2 + $0x20] sm:$0xff]
    %v459 = vld [vmem:[#allocation2 + $0x28] sm:$0xff]
    %v460 = vld [vmem:[#allocation2 + $0x30] sm:$0xff]
    %v461 = vld [vmem:[#allocation2 + $0x38] sm:$0xff]
    %v462 = vld [vmem:[#allocation2 + $0x40] sm:$0xff]
    %v463 = vld [vmem:[#allocation2 + $0x48] sm:$0xff]
    %v464 = vld [vmem:[#allocation2 + $0x50] sm:$0xff]
    %v465 = vld [vmem:[#allocation2 + $0x58] sm:$0xff]
    %v466 = vld [vmem:[#allocation2 + $0x60] sm:$0xff]
    %v467 = vld [vmem:[#allocation2 + $0x68] sm:$0xff]
    %v468 = vld [vmem:[#allocation2 + $0x70] sm:$0xff]
    %v469 = vld [vmem:[#allocation2 + $0x78] sm:$0xff]
    %v470 = vld [vmem:[#allocation2 + $0x80] sm:$0xff]
    %v471 = vld [vmem:[#allocation2 + $0x88] sm:$0xff]
    %v472 = vld [vmem:[#allocation2 + $0x90] sm:$0xff]
    %v473 = vld [vmem:[#allocation2 + $0x98] sm:$0xff]
    %v474 = vld [vmem:[#allocation2 + $0xa0] sm:$0xff]
    %v475 = vld [vmem:[#allocation2 + $0xa8] sm:$0xff]
    %v476 = vld [vmem:[#allocation2 + $0xb0] sm:$0xff]
    %v477 = vld [vmem:[#allocation2 + $0xb8] sm:$0xff]
    %v478 = vld [vmem:[#allocation2 + $0xc0] sm:$0xff]
    %v479 = vld [vmem:[#allocation2 + $0xc8] sm:$0xff]
    %v480 = vld [vmem:[#allocation2 + $0xd0] sm:$0xff]
    %v481 = vld [vmem:[#allocation2 + $0xd8] sm:$0xff]
    %v482 = vld [vmem:[#allocation2 + $0xe0] sm:$0xff]
    %v483 = vld [vmem:[#allocation2 + $0xe8] sm:$0xff]
    %v484 = vld [vmem:[#allocation2 + $0xf0] sm:$0xff]
    %v485 = vld [vmem:[#allocation2 + $0xf8] sm:$0xff]
    %v486 = vld [vmem:[#allocation2 + $0x100] sm:$0xff]
    %v487 = vld [vmem:[#allocation2 + $0x108] sm:$0xff]
    %v488 = vld [vmem:[#allocation2 + $0x110] sm:$0xff]
    %v489 = vld [vmem:[#allocation2 + $0x118] sm:$0xff]
    %v490 = vld [vmem:[#allocation2 + $0x120] sm:$0xff]
    %v491 = vld [vmem:[#allocation2 + $0x128] sm:$0xff]
    %v492 = vld [vmem:[#allocation2 + $0x130] sm:$0xff]
    %v493 = vld [vmem:[#allocation2 + $0x138] sm:$0xff]
    %v494 = vld [vmem:[#allocation2 + $0x140] sm:$0xff]
    %v495 = vld [vmem:[#allocation2 + $0x148] sm:$0xff]
    %v496 = vld [vmem:[#allocation2 + $0x150] sm:$0xff]
    %v497 = vld [vmem:[#allocation2 + $0x158] sm:$0xff]
    %v498 = vld [vmem:[#allocation2 + $0x160] sm:$0xff]
    %v499 = vld [vmem:[#allocation2 + $0x168] sm:$0xff]
    %v500 = vld [vmem:[#allocation2 + $0x170] sm:$0xff]
    %v501 = vld [vmem:[#allocation2 + $0x178] sm:$0xff]
    %v502 = vld [vmem:[#allocation2 + $0x180] sm:$0xff]
    %v503 = vld [vmem:[#allocation2 + $0x188] sm:$0xff]
    %v504 = vld [vmem:[#allocation2 + $0x190] sm:$0xff]
    %v505 = vld [vmem:[#allocation2 + $0x198] sm:$0xff]
    %v506 = vld [vmem:[#allocation2 + $0x1a0] sm:$0xff]
    %v507 = vld [vmem:[#allocation2 + $0x1a8] sm:$0xff]
    %v508 = vld [vmem:[#allocation2 + $0x1b0] sm:$0xff]
    %v509 = vld [vmem:[#allocation2 + $0x1b8] sm:$0xff]
    %v510 = vld [vmem:[#allocation2 + $0x1c0] sm:$0xff]
    %v511 = vld [vmem:[#allocation2 + $0x1c8] sm:$0xff]
    %v512 = vld [vmem:[#allocation2 + $0x1d0] sm:$0xff]
    %v513 = vld [vmem:[#allocation2 + $0x1d8] sm:$0xff]
    %v514 = vld [vmem:[#allocation2 + $0x1e0] sm:$0xff]
    %v515 = vld [vmem:[#allocation2 + $0x1e8] sm:$0xff]
    %v516 = vld [vmem:[#allocation2 + $0x1f0] sm:$0xff]
    %v517 = vld [vmem:[#allocation2 + $0x1f8] sm:$0xff]
    %v518 = vld [vmem:[#allocation2 + $0x200] sm:$0xff]
    %v519 = vld [vmem:[#allocation2 + $0x208] sm:$0xff]
    %v520 = vld [vmem:[#allocation2 + $0x210] sm:$0xff]
    %v521 = vld [vmem:[#allocation2 + $0x218] sm:$0xff]
    %v522 = vld [vmem:[#allocation2 + $0x220] sm:$0xff]
    %v523 = vld [vmem:[#allocation2 + $0x228] sm:$0xff]
    %v524 = vld [vmem:[#allocation2 + $0x230] sm:$0xff]
    %v525 = vld [vmem:[#allocation2 + $0x238] sm:$0xff]
    %v526 = vld [vmem:[#allocation2 + $0x240] sm:$0xff]
    %v527 = vld [vmem:[#allocation2 + $0x248] sm:$0xff]
    %v528 = vld [vmem:[#allocation2 + $0x250] sm:$0xff]
    %v529 = vld [vmem:[#allocation2 + $0x258] sm:$0xff]
    %v530 = vld [vmem:[#allocation2 + $0x260] sm:$0xff]
    %v531 = vld [vmem:[#allocation2 + $0x268] sm:$0xff]
    %v532 = vld [vmem:[#allocation2 + $0x270] sm:$0xff]
    %v533 = vld [vmem:[#allocation2 + $0x278] sm:$0xff]
    %v534 = vld [vmem:[#allocation2 + $0x280] sm:$0xff]
    %v535 = vld [vmem:[#allocation2 + $0x288] sm:$0xff]
    %v536 = vld [vmem:[#allocation2 + $0x290] sm:$0xff]
    %v537 = vld [vmem:[#allocation2 + $0x298] sm:$0xff]
    %v538 = vld [vmem:[#allocation2 + $0x2a0] sm:$0xff]
    %v539 = vld [vmem:[#allocation2 + $0x2a8] sm:$0xff]
    %v540 = vld [vmem:[#allocation2 + $0x2b0] sm:$0xff]
    %v541 = vld [vmem:[#allocation2 + $0x2b8] sm:$0xff]
    %v542 = vld [vmem:[#allocation2 + $0x2c0] sm:$0xff]
    %v543 = vld [vmem:[#allocation2 + $0x2c8] sm:$0xff]
    %v544 = vld [vmem:[#allocation2 + $0x2d0] sm:$0xff]
    %v545 = vld [vmem:[#allocation2 + $0x2d8] sm:$0xff]
    %v546 = vld [vmem:[#allocation2 + $0x2e0] sm:$0xff]
    %v547 = vld [vmem:[#allocation2 + $0x2e8] sm:$0xff]
    %v548 = vld [vmem:[#allocation2 + $0x2f0] sm:$0xff]
    %v549 = vld [vmem:[#allocation2 + $0x2f8] sm:$0xff]
    %v646 = vunpack.c.l.b16 %v454
    %v647 = vunpack.c.h.b16 %v454
    %v648 = vunpack.c.l.b16 %v455
    %v649 = vunpack.c.h.b16 %v455
    %v650 = vunpack.c.l.b16 %v456
    %v651 = vunpack.c.h.b16 %v456
    %v652 = vunpack.c.l.b16 %v457
    %v653 = vunpack.c.h.b16 %v457
    %v654 = vunpack.c.l.b16 %v458
    %v655 = vunpack.c.h.b16 %v458
    %v656 = vunpack.c.l.b16 %v459
    %v657 = vunpack.c.h.b16 %v459
    %v658 = vunpack.c.l.b16 %v460
    %v659 = vunpack.c.h.b16 %v460
    %v660 = vunpack.c.l.b16 %v461
    %v661 = vunpack.c.h.b16 %v461
    %v662 = vunpack.c.l.b16 %v462
    %v663 = vunpack.c.h.b16 %v462
    %v664 = vunpack.c.l.b16 %v463
    %v665 = vunpack.c.h.b16 %v463
    %v666 = vunpack.c.l.b16 %v464
    %v667 = vunpack.c.h.b16 %v464
    %v668 = vunpack.c.l.b16 %v465
    %v669 = vunpack.c.h.b16 %v465
    %v670 = vunpack.c.l.b16 %v466
    %v671 = vunpack.c.h.b16 %v466
    %v672 = vunpack.c.l.b16 %v467
    %v673 = vunpack.c.h.b16 %v467
    %v674 = vunpack.c.l.b16 %v468
    %v675 = vunpack.c.h.b16 %v468
    %v676 = vunpack.c.l.b16 %v469
    %v677 = vunpack.c.h.b16 %v469
    %v678 = vunpack.c.l.b16 %v470
    %v679 = vunpack.c.h.b16 %v470
    %v680 = vunpack.c.l.b16 %v471
    %v681 = vunpack.c.h.b16 %v471
    %v682 = vunpack.c.l.b16 %v472
    %v683 = vunpack.c.h.b16 %v472
    %v684 = vunpack.c.l.b16 %v473
    %v685 = vunpack.c.h.b16 %v473
    %v686 = vunpack.c.l.b16 %v474
    %v687 = vunpack.c.h.b16 %v474
    %v688 = vunpack.c.l.b16 %v475
    %v689 = vunpack.c.h.b16 %v475
    %v690 = vunpack.c.l.b16 %v476
    %v691 = vunpack.c.h.b16 %v476
    %v692 = vunpack.c.l.b16 %v477
    %v693 = vunpack.c.h.b16 %v477
    %v694 = vunpack.c.l.b16 %v478
    %v695 = vunpack.c.h.b16 %v478
    %v696 = vunpack.c.l.b16 %v479
    %v697 = vunpack.c.h.b16 %v479
    %v698 = vunpack.c.l.b16 %v480
    %v699 = vunpack.c.h.b16 %v480
    %v700 = vunpack.c.l.b16 %v481
    %v701 = vunpack.c.h.b16 %v481
    %v702 = vunpack.c.l.b16 %v482
    %v703 = vunpack.c.h.b16 %v482
    %v704 = vunpack.c.l.b16 %v483
    %v705 = vunpack.c.h.b16 %v483
    %v706 = vunpack.c.l.b16 %v484
    %v707 = vunpack.c.h.b16 %v484
    %v708 = vunpack.c.l.b16 %v485
    %v709 = vunpack.c.h.b16 %v485
    %v710 = vunpack.c.l.b16 %v486
    %v711 = vunpack.c.h.b16 %v486
    %v712 = vunpack.c.l.b16 %v487
    %v713 = vunpack.c.h.b16 %v487
    %v714 = vunpack.c.l.b16 %v488
    %v715 = vunpack.c.h.b16 %v488
    %v716 = vunpack.c.l.b16 %v489
    %v717 = vunpack.c.h.b16 %v489
    %v718 = vunpack.c.l.b16 %v490
    %v719 = vunpack.c.h.b16 %v490
    %v720 = vunpack.c.l.b16 %v491
    %v721 = vunpack.c.h.b16 %v491
    %v722 = vunpack.c.l.b16 %v492
    %v723 = vunpack.c.h.b16 %v492
    %v724 = vunpack.c.l.b16 %v493
    %v725 = vunpack.c.h.b16 %v493
    %v726 = vunpack.c.l.b16 %v494
    %v727 = vunpack.c.h.b16 %v494
    %v728 = vunpack.c.l.b16 %v495
    %v729 = vunpack.c.h.b16 %v495
    %v730 = vunpack.c.l.b16 %v496
    %v731 = vunpack.c.h.b16 %v496
    %v732 = vunpack.c.l.b16 %v497
    %v733 = vunpack.c.h.b16 %v497
    %v734 = vunpack.c.l.b16 %v498
    %v735 = vunpack.c.h.b16 %v498
    %v736 = vunpack.c.l.b16 %v499
    %v737 = vunpack.c.h.b16 %v499
    %v738 = vunpack.c.l.b16 %v500
    %v739 = vunpack.c.h.b16 %v500
    %v740 = vunpack.c.l.b16 %v501
    %v741 = vunpack.c.h.b16 %v501
    %v742 = vunpack.c.l.b16 %v502
    %v743 = vunpack.c.h.b16 %v502
    %v744 = vunpack.c.l.b16 %v503
    %v745 = vunpack.c.h.b16 %v503
    %v746 = vunpack.c.l.b16 %v504
    %v747 = vunpack.c.h.b16 %v504
    %v748 = vunpack.c.l.b16 %v505
    %v749 = vunpack.c.h.b16 %v505
    %v750 = vunpack.c.l.b16 %v506
    %v751 = vunpack.c.h.b16 %v506
    %v752 = vunpack.c.l.b16 %v507
    %v753 = vunpack.c.h.b16 %v507
    %v754 = vunpack.c.l.b16 %v508
    %v755 = vunpack.c.h.b16 %v508
    %v756 = vunpack.c.l.b16 %v509
    %v757 = vunpack.c.h.b16 %v509
    %v758 = vunpack.c.l.b16 %v510
    %v759 = vunpack.c.h.b16 %v510
    %v760 = vunpack.c.l.b16 %v511
    %v761 = vunpack.c.h.b16 %v511
    %v762 = vunpack.c.l.b16 %v512
    %v763 = vunpack.c.h.b16 %v512
    %v764 = vunpack.c.l.b16 %v513
    %v765 = vunpack.c.h.b16 %v513
    %v766 = vunpack.c.l.b16 %v514
    %v767 = vunpack.c.h.b16 %v514
    %v768 = vunpack.c.l.b16 %v515
    %v769 = vunpack.c.h.b16 %v515
    %v770 = vunpack.c.l.b16 %v516
    %v771 = vunpack.c.h.b16 %v516
    %v772 = vunpack.c.l.b16 %v517
    %v773 = vunpack.c.h.b16 %v517
    %v774 = vunpack.c.l.b16 %v518
    %v775 = vunpack.c.h.b16 %v518
    %v776 = vunpack.c.l.b16 %v519
    %v777 = vunpack.c.h.b16 %v519
    %v778 = vunpack.c.l.b16 %v520
    %v779 = vunpack.c.h.b16 %v520
    %v780 = vunpack.c.l.b16 %v521
    %v781 = vunpack.c.h.b16 %v521
    %v782 = vunpack.c.l.b16 %v522
    %v783 = vunpack.c.h.b16 %v522
    %v784 = vunpack.c.l.b16 %v523
    %v785 = vunpack.c.h.b16 %v523
    %v786 = vunpack.c.l.b16 %v524
    %v787 = vunpack.c.h.b16 %v524
    %v788 = vunpack.c.l.b16 %v525
    %v789 = vunpack.c.h.b16 %v525
    %v790 = vunpack.c.l.b16 %v526
    %v791 = vunpack.c.h.b16 %v526
    %v792 = vunpack.c.l.b16 %v527
    %v793 = vunpack.c.h.b16 %v527
    %v794 = vunpack.c.l.b16 %v528
    %v795 = vunpack.c.h.b16 %v528
    %v796 = vunpack.c.l.b16 %v529
    %v797 = vunpack.c.h.b16 %v529
    %v798 = vunpack.c.l.b16 %v530
    %v799 = vunpack.c.h.b16 %v530
    %v800 = vunpack.c.l.b16 %v531
    %v801 = vunpack.c.h.b16 %v531
    %v802 = vunpack.c.l.b16 %v532
    %v803 = vunpack.c.h.b16 %v532
    %v804 = vunpack.c.l.b16 %v533
    %v805 = vunpack.c.h.b16 %v533
    %v806 = vunpack.c.l.b16 %v534
    %v807 = vunpack.c.h.b16 %v534
    %v808 = vunpack.c.l.b16 %v535
    %v809 = vunpack.c.h.b16 %v535
    %v810 = vunpack.c.l.b16 %v536
    %v811 = vunpack.c.h.b16 %v536
    %v812 = vunpack.c.l.b16 %v537
    %v813 = vunpack.c.h.b16 %v537
    %v814 = vunpack.c.l.b16 %v538
    %v815 = vunpack.c.h.b16 %v538
    %v816 = vunpack.c.l.b16 %v539
    %v817 = vunpack.c.h.b16 %v539
    %v818 = vunpack.c.l.b16 %v540
    %v819 = vunpack.c.h.b16 %v540
    %v820 = vunpack.c.l.b16 %v541
    %v821 = vunpack.c.h.b16 %v541
    %v822 = vunpack.c.l.b16 %v542
    %v823 = vunpack.c.h.b16 %v542
    %v824 = vunpack.c.l.b16 %v543
    %v825 = vunpack.c.h.b16 %v543
    %v826 = vunpack.c.l.b16 %v544
    %v827 = vunpack.c.h.b16 %v544
    %v828 = vunpack.c.l.b16 %v545
    %v829 = vunpack.c.h.b16 %v545
    %v830 = vunpack.c.l.b16 %v546
    %v831 = vunpack.c.h.b16 %v546
    %v832 = vunpack.c.l.b16 %v547
    %v833 = vunpack.c.h.b16 %v547
    %v834 = vunpack.c.l.b16 %v548
    %v835 = vunpack.c.h.b16 %v548
    %v836 = vunpack.c.l.b16 %v549
    %v837 = vunpack.c.h.b16 %v549
    %v838 = vpack.c.b16 %v648, %v646
    %v839 = vpack.c.b16 %v649, %v647
    %v840 = vpack.c.b16 %v652, %v650
    %v841 = vpack.c.b16 %v653, %v651
    %v842 = vpack.c.b16 %v656, %v654
    %v843 = vpack.c.b16 %v657, %v655
    %v844 = vpack.c.b16 %v660, %v658
    %v845 = vpack.c.b16 %v661, %v659
    %v846 = vpack.c.b16 %v664, %v662
    %v847 = vpack.c.b16 %v665, %v663
    %v848 = vpack.c.b16 %v668, %v666
    %v849 = vpack.c.b16 %v669, %v667
    %v850 = vpack.c.b16 %v672, %v670
    %v851 = vpack.c.b16 %v673, %v671
    %v852 = vpack.c.b16 %v676, %v674
    %v853 = vpack.c.b16 %v677, %v675
    %v854 = vpack.c.b16 %v680, %v678
    %v855 = vpack.c.b16 %v681, %v679
    %v856 = vpack.c.b16 %v684, %v682
    %v857 = vpack.c.b16 %v685, %v683
    %v858 = vpack.c.b16 %v688, %v686
    %v859 = vpack.c.b16 %v689, %v687
    %v860 = vpack.c.b16 %v692, %v690
    %v861 = vpack.c.b16 %v693, %v691
    %v862 = vpack.c.b16 %v696, %v694
    %v863 = vpack.c.b16 %v697, %v695
    %v864 = vpack.c.b16 %v700, %v698
    %v865 = vpack.c.b16 %v701, %v699
    %v866 = vpack.c.b16 %v704, %v702
    %v867 = vpack.c.b16 %v705, %v703
    %v868 = vpack.c.b16 %v708, %v706
    %v869 = vpack.c.b16 %v709, %v707
    %v870 = vpack.c.b16 %v712, %v710
    %v871 = vpack.c.b16 %v713, %v711
    %v872 = vpack.c.b16 %v716, %v714
    %v873 = vpack.c.b16 %v717, %v715
    %v874 = vpack.c.b16 %v720, %v718
    %v875 = vpack.c.b16 %v721, %v719
    %v876 = vpack.c.b16 %v724, %v722
    %v877 = vpack.c.b16 %v725, %v723
    %v878 = vpack.c.b16 %v728, %v726
    %v879 = vpack.c.b16 %v729, %v727
    %v880 = vpack.c.b16 %v732, %v730
    %v881 = vpack.c.b16 %v733, %v731
    %v882 = vpack.c.b16 %v736, %v734
    %v883 = vpack.c.b16 %v737, %v735
    %v884 = vpack.c.b16 %v740, %v738
    %v885 = vpack.c.b16 %v741, %v739
    %v886 = vpack.c.b16 %v744, %v742
    %v887 = vpack.c.b16 %v745, %v743
    %v888 = vpack.c.b16 %v748, %v746
    %v889 = vpack.c.b16 %v749, %v747
    %v890 = vpack.c.b16 %v752, %v750
    %v891 = vpack.c.b16 %v753, %v751
    %v892 = vpack.c.b16 %v756, %v754
    %v893 = vpack.c.b16 %v757, %v755
    %v894 = vpack.c.b16 %v760, %v758
    %v895 = vpack.c.b16 %v761, %v759
    %v896 = vpack.c.b16 %v764, %v762
    %v897 = vpack.c.b16 %v765, %v763
    %v898 = vpack.c.b16 %v768, %v766
    %v899 = vpack.c.b16 %v769, %v767
    %v900 = vpack.c.b16 %v772, %v770
    %v901 = vpack.c.b16 %v773, %v771
    %v902 = vpack.c.b16 %v776, %v774
    %v903 = vpack.c.b16 %v777, %v775
    %v904 = vpack.c.b16 %v780, %v778
    %v905 = vpack.c.b16 %v781, %v779
    %v906 = vpack.c.b16 %v784, %v782
    %v907 = vpack.c.b16 %v785, %v783
    %v908 = vpack.c.b16 %v788, %v786
    %v909 = vpack.c.b16 %v789, %v787
    %v910 = vpack.c.b16 %v792, %v790
    %v911 = vpack.c.b16 %v793, %v791
    %v912 = vpack.c.b16 %v796, %v794
    %v913 = vpack.c.b16 %v797, %v795
    %v914 = vpack.c.b16 %v800, %v798
    %v915 = vpack.c.b16 %v801, %v799
    %v916 = vpack.c.b16 %v804, %v802
    %v917 = vpack.c.b16 %v805, %v803
    %v918 = vpack.c.b16 %v808, %v806
    %v919 = vpack.c.b16 %v809, %v807
    %v920 = vpack.c.b16 %v812, %v810
    %v921 = vpack.c.b16 %v813, %v811
    %v922 = vpack.c.b16 %v816, %v814
    %v923 = vpack.c.b16 %v817, %v815
    %v924 = vpack.c.b16 %v820, %v818
    %v925 = vpack.c.b16 %v821, %v819
    %v926 = vpack.c.b16 %v824, %v822
    %v927 = vpack.c.b16 %v825, %v823
    %v928 = vpack.c.b16 %v828, %v826
    %v929 = vpack.c.b16 %v829, %v827
    %v930 = vpack.c.b16 %v832, %v830
    %v931 = vpack.c.b16 %v833, %v831
    %v932 = vpack.c.b16 %v836, %v834
    %v933 = vpack.c.b16 %v837, %v835
    %1030 = vmatprep.subr.bf16.mxu0 %v839
    %1031 = vmatpush1.bf16.msra.mxu0 %v838
    %1032 = vmatprep.subr.bf16.mxu0 %v841
    %1033 = vmatpush1.bf16.msra.mxu0 %v840
    %1034 = vmatprep.subr.bf16.mxu0 %v843
    %1035 = vmatpush1.bf16.msra.mxu0 %v842
    %1036 = vmatprep.subr.bf16.mxu0 %v845
    %1037 = vmatpush1.bf16.msra.mxu0 %v844
    %1038 = vmatprep.subr.bf16.mxu0 %v847
    %1039 = vmatpush1.bf16.msra.mxu0 %v846
    %1040 = vmatprep.subr.bf16.mxu0 %v849
    %1041 = vmatpush1.bf16.msra.mxu0 %v848
    %1042 = vmatprep.subr.bf16.mxu0 %v851
    %1043 = vmatpush1.bf16.msra.mxu0 %v850
    %1044 = vmatprep.subr.bf16.mxu0 %v853
    %1045 = vmatpush1.bf16.msra.mxu0 %v852
    %1046 = vmatprep.subr.bf16.mxu0 %v855
    %1047 = vmatpush1.bf16.msra.mxu0 %v854
    %1048 = vmatprep.subr.bf16.mxu0 %v857
    %1049 = vmatpush1.bf16.msra.mxu0 %v856
    %1050 = vmatprep.subr.bf16.mxu0 %v859
    %1051 = vmatpush1.bf16.msra.mxu0 %v858
    %1052 = vmatprep.subr.bf16.mxu0 %v861
    %1053 = vmatpush1.bf16.msra.mxu0 %v860
    %1054 = vmatprep.subr.bf16.mxu0 %v863
    %1055 = vmatpush1.bf16.msra.mxu0 %v862
    %1056 = vmatprep.subr.bf16.mxu0 %v865
    %1057 = vmatpush1.bf16.msra.mxu0 %v864
    %1058 = vmatprep.subr.bf16.mxu0 %v867
    %1059 = vmatpush1.bf16.msra.mxu0 %v866
    %1060 = vmatprep.subr.bf16.mxu0 %v869
    %1061 = vmatpush1.bf16.msra.mxu0 %v868
    %1062 = vmatprep.mubr.bf16.mxu0 %v443
    %1063 = vmatmul.mubr.bf16.gmra.mrb[0].mxu0 %v442
    %v1064 = vpop.f32.mrb[0].mxu0
    %v1065 = vadd.f32 0.0, %v1064
    %v1066 = vpop.f32.mrb[0].mxu0
    %v1067 = vadd.f32 0.0, %v1066
    %v1068 = vpop.f32.mrb[0].mxu0
    %v1069 = vadd.f32 0.0, %v1068
    %v1070 = vpop.f32.mrb[0].mxu0
    %v1071 = vadd.f32 0.0, %v1070
    %1072 = vmatprep.mubr.bf16.mxu0 %v449
    %1073 = vmatmul.mubr.bf16.gmra.mrb[0].mxu0 %v448
    %v1074 = vpop.f32.mrb[0].mxu0
    %v1075 = vadd.f32 0.0, %v1074
    %v1076 = vpop.f32.mrb[0].mxu0
    %v1077 = vadd.f32 0.0, %v1076
    %v1078 = vpop.f32.mrb[0].mxu0
    %v1079 = vadd.f32 0.0, %v1078
    %v1080 = vpop.f32.mrb[0].mxu0
    %v1081 = vadd.f32 0.0, %v1080
    %1082 = vdwg.mxu0
    %1083 = vmatprep.subr.bf16.mxu0 %v871
    %1084 = vmatpush1.bf16.msra.mxu0 %v870
    %1085 = vmatprep.subr.bf16.mxu0 %v873
    %1086 = vmatpush1.bf16.msra.mxu0 %v872
    %1087 = vmatprep.subr.bf16.mxu0 %v875
    %1088 = vmatpush1.bf16.msra.mxu0 %v874
    %1089 = vmatprep.subr.bf16.mxu0 %v877
    %1090 = vmatpush1.bf16.msra.mxu0 %v876
    %1091 = vmatprep.subr.bf16.mxu0 %v879
    %1092 = vmatpush1.bf16.msra.mxu0 %v878
    %1093 = vmatprep.subr.bf16.mxu0 %v881
    %1094 = vmatpush1.bf16.msra.mxu0 %v880
    %1095 = vmatprep.subr.bf16.mxu0 %v883
    %1096 = vmatpush1.bf16.msra.mxu0 %v882
    %1097 = vmatprep.subr.bf16.mxu0 %v885
    %1098 = vmatpush1.bf16.msra.mxu0 %v884
    %1099 = vmatprep.subr.bf16.mxu0 %v887
    %1100 = vmatpush1.bf16.msra.mxu0 %v886
    %1101 = vmatprep.subr.bf16.mxu0 %v889
    %1102 = vmatpush1.bf16.msra.mxu0 %v888
    %1103 = vmatprep.subr.bf16.mxu0 %v891
    %1104 = vmatpush1.bf16.msra.mxu0 %v890
    %1105 = vmatprep.subr.bf16.mxu0 %v893
    %1106 = vmatpush1.bf16.msra.mxu0 %v892
    %1107 = vmatprep.subr.bf16.mxu0 %v895
    %1108 = vmatpush1.bf16.msra.mxu0 %v894
    %1109 = vmatprep.subr.bf16.mxu0 %v897
    %1110 = vmatpush1.bf16.msra.mxu0 %v896
    %1111 = vmatprep.subr.bf16.mxu0 %v899
    %1112 = vmatpush1.bf16.msra.mxu0 %v898
    %1113 = vmatprep.subr.bf16.mxu0 %v901
    %1114 = vmatpush1.bf16.msra.mxu0 %v900
    %1115 = vmatprep.mubr.bf16.mxu0 %v445
    %1116 = vmatmul.mubr.bf16.gmra.mrb[0].mxu0 %v444
    %v1117 = vpop.f32.mrb[0].mxu0
    %v1118 = vadd.f32 %v1065, %v1117
    %v1119 = vpop.f32.mrb[0].mxu0
    %v1120 = vadd.f32 %v1067, %v1119
    %v1121 = vpop.f32.mrb[0].mxu0
    %v1122 = vadd.f32 %v1069, %v1121
    %v1123 = vpop.f32.mrb[0].mxu0
    %v1124 = vadd.f32 %v1071, %v1123
    %1125 = vmatprep.mubr.bf16.mxu0 %v451
    %1126 = vmatmul.mubr.bf16.gmra.mrb[0].mxu0 %v450
    %v1127 = vpop.f32.mrb[0].mxu0
    %v1128 = vadd.f32 %v1075, %v1127
    %v1129 = vpop.f32.mrb[0].mxu0
    %v1130 = vadd.f32 %v1077, %v1129
    %v1131 = vpop.f32.mrb[0].mxu0
    %v1132 = vadd.f32 %v1079, %v1131
    %v1133 = vpop.f32.mrb[0].mxu0
    %v1134 = vadd.f32 %v1081, %v1133
    %1135 = vdwg.mxu0
    %1136 = vmatprep.subr.bf16.mxu0 %v903
    %1137 = vmatpush1.bf16.msra.mxu0 %v902
    %1138 = vmatprep.subr.bf16.mxu0 %v905
    %1139 = vmatpush1.bf16.msra.mxu0 %v904
    %1140 = vmatprep.subr.bf16.mxu0 %v907
    %1141 = vmatpush1.bf16.msra.mxu0 %v906
    %1142 = vmatprep.subr.bf16.mxu0 %v909
    %1143 = vmatpush1.bf16.msra.mxu0 %v908
    %1144 = vmatprep.subr.bf16.mxu0 %v911
    %1145 = vmatpush1.bf16.msra.mxu0 %v910
    %1146 = vmatprep.subr.bf16.mxu0 %v913
    %1147 = vmatpush1.bf16.msra.mxu0 %v912
    %1148 = vmatprep.subr.bf16.mxu0 %v915
    %1149 = vmatpush1.bf16.msra.mxu0 %v914
    %1150 = vmatprep.subr.bf16.mxu0 %v917
    %1151 = vmatpush1.bf16.msra.mxu0 %v916
    %1152 = vmatprep.subr.bf16.mxu0 %v919
    %1153 = vmatpush1.bf16.msra.mxu0 %v918
    %1154 = vmatprep.subr.bf16.mxu0 %v921
    %1155 = vmatpush1.bf16.msra.mxu0 %v920
    %1156 = vmatprep.subr.bf16.mxu0 %v923
    %1157 = vmatpush1.bf16.msra.mxu0 %v922
    %1158 = vmatprep.subr.bf16.mxu0 %v925
    %1159 = vmatpush1.bf16.msra.mxu0 %v924
    %1160 = vmatprep.subr.bf16.mxu0 %v927
    %1161 = vmatpush1.bf16.msra.mxu0 %v926
    %1162 = vmatprep.subr.bf16.mxu0 %v929
    %1163 = vmatpush1.bf16.msra.mxu0 %v928
    %1164 = vmatprep.subr.bf16.mxu0 %v931
    %1165 = vmatpush1.bf16.msra.mxu0 %v930
    %1166 = vmatprep.subr.bf16.mxu0 %v933
    %1167 = vmatpush1.bf16.msra.mxu0 %v932
    %1168 = vmatprep.mubr.bf16.mxu0 %v447
    %1169 = vmatmul.mubr.bf16.gmra.mrb[0].mxu0 %v446
    %v1170 = vpop.f32.mrb[0].mxu0
    %v1171 = vadd.f32 %v1118, %v1170
    %v1172 = vpop.f32.mrb[0].mxu0
    %v1173 = vadd.f32 %v1120, %v1172
    %v1174 = vpop.f32.mrb[0].mxu0
    %v1175 = vadd.f32 %v1122, %v1174
    %v1176 = vpop.f32.mrb[0].mxu0
    %v1177 = vadd.f32 %v1124, %v1176
    %1178 = vmatprep.mubr.bf16.mxu0 %v453
    %1179 = vmatmul.mubr.bf16.gmra.mrb[0].mxu0 %v452
    %v1180 = vpop.f32.mrb[0].mxu0
    %v1181 = vadd.f32 %v1128, %v1180
    %v1182 = vpop.f32.mrb[0].mxu0
    %v1183 = vadd.f32 %v1130, %v1182
    %v1184 = vpop.f32.mrb[0].mxu0
    %v1185 = vadd.f32 %v1132, %v1184
    %v1186 = vpop.f32.mrb[0].mxu0
    %v1187 = vadd.f32 %v1134, %v1186
    %1188 = vdwg.mxu0
    %v1189 = vld [vmem:[%s4] ss:$2 sm:$0x3]
    %s1190 = scalar_lea.vmem %s4, 1
    %v1191 = vld [vmem:[%s1190] ss:$2 sm:$0x3]
    %v1192 = vadd.f32 %v1171, %v1175
    %v1193 = vadd.f32 %v1192, %v1181
    %v1194 = vadd.f32 %v1193, %v1185
    %v1195 = vrot.slane %v1194, 4
    %v1196 = vadd.f32 %v1194, %v1195
    %v1197 = vrot.slane %v1196, 2
    %v1198 = vadd.f32 %v1196, %v1197
    %v1199 = vrot.slane %v1198, 1
    %v1200 = vadd.f32 %v1198, %v1199
    %v1201 = vadd.f32 %v1173, %v1177
    %v1202 = vadd.f32 %v1201, %v1183
    %v1203 = vadd.f32 %v1202, %v1187
    %v1204 = vrot.slane %v1203, 4
    %v1205 = vadd.f32 %v1203, %v1204
    %v1206 = vrot.slane %v1205, 2
    %v1207 = vadd.f32 %v1205, %v1206
    %v1208 = vrot.slane %v1207, 1
    %v1209 = vadd.f32 %v1207, %v1208
    %v1210 = vmul.f32 %v1171, %v1171
    %v1211 = vmul.f32 %v1173, %v1173
    %v1212 = vmul.f32 %v1175, %v1175
    %v1213 = vmul.f32 %v1177, %v1177
    %v1214 = vmul.f32 %v1181, %v1181
    %v1215 = vmul.f32 %v1183, %v1183
    %v1216 = vmul.f32 %v1185, %v1185
    %v1217 = vmul.f32 %v1187, %v1187
    %v1218 = vadd.f32 %v1210, %v1212
    %v1219 = vadd.f32 %v1218, %v1214
    %v1220 = vadd.f32 %v1219, %v1216
    %v1221 = vrot.slane %v1220, 4
    %v1222 = vadd.f32 %v1220, %v1221
    %v1223 = vrot.slane %v1222, 2
    %v1224 = vadd.f32 %v1222, %v1223
    %v1225 = vrot.slane %v1224, 1
    %v1226 = vadd.f32 %v1224, %v1225
    %v1227 = vadd.f32 %v1211, %v1213
    %v1228 = vadd.f32 %v1227, %v1215
    %v1229 = vadd.f32 %v1228, %v1217
    %v1230 = vrot.slane %v1229, 4
    %v1231 = vadd.f32 %v1229, %v1230
    %v1232 = vrot.slane %v1231, 2
    %v1233 = vadd.f32 %v1231, %v1232
    %v1234 = vrot.slane %v1233, 1
    %v1235 = vadd.f32 %v1233, %v1234
    %v1236 = vsel %vm204, %v1200, %v1226
    %v1237 = vsel %vm204, %v1209, %v1235
    %1238 = vrot.lane.b32.xlu0 %v1236, 16
    %v1239 = vpop.permute.xlu0 %1238
    %1240 = vrot.lane.b32.xlu0 %v1237, 16
    %v1241 = vpop.permute.xlu0 %1240
    %v1242 = vsel %vm213, %v1239, %v1241
    %v1243 = vsel %vm213, %v1241, %v1239
    %v1244 = vadd.f32 %v1236, %v1243
    %v1245 = vadd.f32 %v1237, %v1242
    %1246 = vrot.lane.b32.xlu0 %v1244, 32
    %v1247 = vpop.permute.xlu0 %1246
    %1248 = vrot.lane.b32.xlu0 %v1245, 32
    %v1249 = vpop.permute.xlu0 %1248
    %v1250 = vsel %vm222, %v1247, %v1249
    %v1251 = vsel %vm222, %v1249, %v1247
    %v1252 = vadd.f32 %v1244, %v1251
    %v1253 = vadd.f32 %v1245, %v1250
    %1254 = vrot.lane.b32.xlu0 %v1252, 64
    %v1255 = vpop.permute.xlu0 %1254
    %1256 = vrot.lane.b32.xlu0 %v1253, 64
    %v1257 = vpop.permute.xlu0 %1256
    %v1258 = vsel %vm231, %v1255, %v1257
    %v1259 = vsel %vm231, %v1257, %v1255
    %v1260 = vadd.f32 %v1252, %v1259
    %v1261 = vadd.f32 %v1253, %v1258
    %v1262 = vadd.f32 %v1260, %v1261
    %v1263 = vmul.f32 %v1262, 0.001953125
    %v1264 = vmul.f32 %v1263, %v1263
    %v1266 = vrot.slane %v1264, 7
    %v1268 = vsub.f32 %v1263, %v1266
    %v1269 = vlaneseq
    %v1270 = vshrl.u32 %v1269, 7
    %v1271 = vsub.s32 0, %v1270
    %v1272 = vrot.slane %v1263, %v1271
    %v1273 = vsub.f32 %v1171, %v1272
    %v1274 = vsub.f32 %v1173, %v1272
    %v1275 = vsub.f32 %v1175, %v1272
    %v1276 = vsub.f32 %v1177, %v1272
    %v1277 = vsub.f32 %v1181, %v1272
    %v1278 = vsub.f32 %v1183, %v1272
    %v1279 = vsub.f32 %v1185, %v1272
    %v1280 = vsub.f32 %v1187, %v1272
    %v1281 = vadd.f32 %v1268, 1e-05
    %v1282 = vrsqrt.pop %v1281
    %v1283 = vlaneseq
    %v1284 = vshrl.u32 %v1283, 7
    %v1285 = vsub.s32 1, %v1284
    %v1286 = vrot.slane %v1282, %v1285
    %v1287 = vmul.f32 %v1273, %v1286
    %v1288 = vmul.f32 %v1274, %v1286
    %v1289 = vmul.f32 %v1275, %v1286
    %v1290 = vmul.f32 %v1276, %v1286
    %v1291 = vmul.f32 %v1277, %v1286
    %v1292 = vmul.f32 %v1278, %v1286
    %v1293 = vmul.f32 %v1279, %v1286
    %v1294 = vmul.f32 %v1280, %v1286
    %v1296 = vlaneseq
    %v1297 = vshrl.u32 %v1296, 7
    %v1298 = vsub.s32 0, %v1297
    %v1299 = vrot.slane %v1189, %v1298
    %v1300 = vlaneseq
    %v1301 = vshrl.u32 %v1300, 7
    %v1302 = vsub.s32 1, %v1301
    %v1303 = vrot.slane %v1189, %v1302
    %v1306 = vmul.f32 %v1287, %v1299
    %v1307 = vmul.f32 %v1288, %v1303
    %v1308 = vmul.f32 %v1289, %v1299
    %v1309 = vmul.f32 %v1290, %v1303
    %v1310 = vmul.f32 %v1291, %v1299
    %v1311 = vmul.f32 %v1292, %v1303
    %v1312 = vmul.f32 %v1293, %v1299
    %v1313 = vmul.f32 %v1294, %v1303
    %v1315 = vlaneseq
    %v1316 = vshrl.u32 %v1315, 7
    %v1317 = vsub.s32 0, %v1316
    %v1318 = vrot.slane %v1191, %v1317
    %v1319 = vlaneseq
    %v1320 = vshrl.u32 %v1319, 7
    %v1321 = vsub.s32 1, %v1320
    %v1322 = vrot.slane %v1191, %v1321
    %v1325 = vadd.f32 %v1306, %v1318
    %v1326 = vadd.f32 %v1307, %v1322
    %v1327 = vadd.f32 %v1308, %v1318
    %v1328 = vadd.f32 %v1309, %v1322
    %v1329 = vadd.f32 %v1310, %v1318
    %v1330 = vadd.f32 %v1311, %v1322
    %v1331 = vadd.f32 %v1312, %v1318
    %v1332 = vadd.f32 %v1313, %v1322
    %v1333 = vmax.f32 %v1325, 0.0
    %v1334 = vmax.f32 %v1326, 0.0
    %v1335 = vmax.f32 %v1327, 0.0
    %v1336 = vmax.f32 %v1328, 0.0
    %v1337 = vmax.f32 %v1329, 0.0
    %v1338 = vmax.f32 %v1330, 0.0
    %v1339 = vmax.f32 %v1331, 0.0
    %v1340 = vmax.f32 %v1332, 0.0
    %1341 = vst [vmem:[%s5] sm:$0xff] %v1333
    %1342 = vst [vmem:[%s5 + $0x8] sm:$0xff] %v1334
    %1343 = vst [vmem:[%s5 + $0x10] sm:$0xff] %v1335
    %1344 = vst [vmem:[%s5 + $0x18] sm:$0xff] %v1336
    %1345 = vst [vmem:[%s5 + $0x20] sm:$0xff] %v1337
    %1346 = vst [vmem:[%s5 + $0x28] sm:$0xff] %v1338
    %1347 = vst [vmem:[%s5 + $0x30] sm:$0xff] %v1339
    %1348 = vst [vmem:[%s5 + $0x38] sm:$0xff] %v1340
    // Predicated region
    $region26: #{block1_forward.1} parent=1 // pred_check
      _
    $region27: #{block1_forward.1} parent=1 // pred_check_branch
      %1350 = sbr.rel (0) target = $region29
    $region28: #{block1_forward.1} parent=1 // pred_region
      _
    $region29: #{block1_forward.1} parent=1 // pred_fallthru
      _
    // Predicated region
    $region30: #{block1_forward.1} parent=1 // pred_check
      _
    $region31: #{block1_forward.1} parent=1 // pred_check_branch
      %1352 = sbr.rel (0) target = $region33
    $region32: #{block1_forward.1} parent=1 // pred_region
      _
    $region33: #{block1_forward.1} parent=1 // pred_fallthru
      _
    %1353 = vsyncpa [#allocation3], 1

</llo_original>
